<compile_context>
chip_gen: v7x
topology: tpu7x:2x2x1
jax: 0.10.0
libtpu: 0.0.40
codegen_flags: <defaults>
</compile_context>

<pallas_src>
import math
from functools import partial

import jax
import jax.numpy as jnp
from jax import lax
from jax.experimental import pallas as pl
from jax.experimental.pallas import tpu as pltpu


def _attend_one_head(q, k, v, o_ref, acc_ref, *, num_heads, d_head):
    """Single-head attention for the current (batch, head) grid point.

    q, k, v: (L, Dh) f32 projections for head h = pl.program_id(1).
    Accumulates the head output into the full-width f32 scratch `acc_ref`
    (lane range [h*Dh, (h+1)*Dh)) and stores the dense (L, E) slab to `o_ref`
    at the last head.
    """
    h = pl.program_id(1)
    emb = acc_ref.shape[1]

    scale = 1.0 / math.sqrt(d_head)
    qb = (q * scale).astype(jnp.bfloat16)      # fold 1/sqrt(Dh) into Q
    kb = k.astype(jnp.bfloat16)
    vb = v.astype(jnp.bfloat16)

    # QK^T without an explicit transpose: contract last dim of both operands.
    s = lax.dot_general(qb, kb, (((1,), (1,)), ((), ())),
                        preferred_element_type=jnp.float32)          # (L, L) f32
    s = s - jnp.max(s, axis=-1, keepdims=True)
    p = jnp.exp(s)
    denom = jnp.sum(p, axis=-1, keepdims=True)
    # EUP reciprocal instead of a VPU divide (~1e-3 rel err; fine for eval).
    p = p * pl.reciprocal(denom, approx=True)
    # dropout(p) is identity in eval mode.

    out_h = jnp.dot(p.astype(jnp.bfloat16), vb,
                    preferred_element_type=jnp.float32)              # (L, Dh) f32

    # Lane-dense scatter: place out_h at output columns [h*Dh, (h+1)*Dh) via a
    # 0/1 selection matrix on the MXU.  Avoids dynamic-lane masked stores and
    # keeps the final HBM store a single dense (L, E) slab.
    d_ids = lax.broadcasted_iota(jnp.int32, (d_head, emb), 0)
    e_ids = lax.broadcasted_iota(jnp.int32, (d_head, emb), 1)
    sel = (e_ids == d_ids + h * d_head).astype(jnp.float32)          # (Dh, E)
    contrib = jnp.dot(out_h, sel, preferred_element_type=jnp.float32)  # (L, E)

    @pl.when(h == 0)
    def _():
        acc_ref[...] = jnp.zeros_like(acc_ref)

    acc_ref[...] += contrib                                          # exact: disjoint lanes

    @pl.when(h == num_heads - 1)
    def _():
        o_ref[0] = acc_ref[...].astype(o_ref.dtype)                  # one dense store per batch


def _mha_self_kernel(x_ref, w_ref, b_ref, o_ref, acc_ref, *, num_heads, d_head):
    """Self-attention path: one input tensor feeds Q, K and V projections."""
    x = x_ref[0].astype(jnp.bfloat16)                                # (L, E)
    w = w_ref[0]                                                     # (E, 3*Dh) bf16
    # One fused, lane-dense per-head projection: (L,E) @ (E,3Dh), f32 accumulate.
    qkv = jnp.dot(x, w, preferred_element_type=jnp.float32) + b_ref[0]   # (L, 3*Dh)
    q = qkv[:, :d_head]
    k = qkv[:, d_head:2 * d_head]
    v = qkv[:, 2 * d_head:]
    _attend_one_head(q, k, v, o_ref, acc_ref, num_heads=num_heads, d_head=d_head)


def _mha_cross_kernel(q_ref, k_ref, v_ref, w_ref, b_ref, o_ref, acc_ref, *,
                      num_heads, d_head):
    """General path: distinct query / key / value tensors."""
    w = w_ref[0]                                                     # (E, 3*Dh) bf16
    b = b_ref[0]                                                     # (1, 3*Dh) f32
    q = jnp.dot(q_ref[0].astype(jnp.bfloat16), w[:, :d_head],
                preferred_element_type=jnp.float32) + b[:, :d_head]
    k = jnp.dot(k_ref[0].astype(jnp.bfloat16), w[:, d_head:2 * d_head],
                preferred_element_type=jnp.float32) + b[:, d_head:2 * d_head]
    v = jnp.dot(v_ref[0].astype(jnp.bfloat16), w[:, 2 * d_head:],
                preferred_element_type=jnp.float32) + b[:, 2 * d_head:]
    _attend_one_head(q, k, v, o_ref, acc_ref, num_heads=num_heads, d_head=d_head)


def _vmem_limit_bytes(n_act_inputs, L, E, d_head, act_itemsize):
    """Request enough scoped VMEM for the blocks + intermediates, capped by HW."""
    est = (n_act_inputs * 2 * L * E * act_itemsize      # double-buffered input blocks
           + 2 * L * E * act_itemsize                   # double-buffered output block
           + 2 * (E * 3 * d_head * 2 + 3 * d_head * 4)  # weights (bf16) + bias blocks
           + L * E * 4                                  # f32 accumulator scratch
           + 3 * L * L * 4                              # one head's scores/probs
           + 8 * L * d_head * 4)                        # q/k/v/out_h intermediates
    cap = 64 * 1024 * 1024                              # conservative default (v7x per-TC)
    try:
        info = pltpu.get_tpu_info()
        cap = getattr(info, "vmem_capacity_bytes", cap) or cap
    except Exception:
        pass
    limit = max(32 * 1024 * 1024, int(est * 1.4))
    return min(limit, int(cap * 0.85))                  # leave ~15% headroom


def multihead_attention(query, key, value,
                        wq, bq, wk, bk, wv, bv,
                        num_heads):
    """query/key/value: (B, L, E).  wX: (E, E) laid out so y = x @ wX + bX; bX: (E,)."""
    B, L, E = query.shape
    assert E % num_heads == 0
    d_head = E // num_heads

    # Pack per-head fused QKV weights: (H, E, 3*Dh) bf16, biases (H, 1, 3*Dh) f32.
    # Head h uses projection output columns [h*Dh, (h+1)*Dh).  One-time, tiny.
    def per_head(w):
        return w.reshape(E, num_heads, d_head).transpose(1, 0, 2)    # (H, E, Dh)

    w_qkv = jnp.concatenate([per_head(wq), per_head(wk), per_head(wv)],
                            axis=-1).astype(jnp.bfloat16)            # (H, E, 3*Dh)
    b_qkv = jnp.concatenate([bq.reshape(num_heads, 1, d_head),
                             bk.reshape(num_heads, 1, d_head),
                             bv.reshape(num_heads, 1, d_head)],
                            axis=-1).astype(jnp.float32)             # (H, 1, 3*Dh)

    x_spec = pl.BlockSpec((1, L, E), lambda b, h: (b, 0, 0))         # resident across h
    w_spec = pl.BlockSpec((1, E, 3 * d_head), lambda b, h: (h, 0, 0))
    bias_spec = pl.BlockSpec((1, 1, 3 * d_head), lambda b, h: (h, 0, 0))
    o_spec = pl.BlockSpec((1, L, E), lambda b, h: (b, 0, 0))         # accumulator over h

    self_attn = (query is key) and (key is value)
    act_itemsize = query.dtype.itemsize

    if self_attn:
        # Dedup: same (L, E) slab feeds Q/K/V -> DMA'd and buffered once.
        kernel = partial(_mha_self_kernel, num_heads=num_heads, d_head=d_head)
        in_specs = [x_spec, w_spec, bias_spec]
        args = (query, w_qkv, b_qkv)
        n_act = 1
    else:
        kernel = partial(_mha_cross_kernel, num_heads=num_heads, d_head=d_head)
        in_specs = [x_spec, x_spec, x_spec, w_spec, bias_spec]
        args = (query, key, value, w_qkv, b_qkv)
        n_act = 3

    out = pl.pallas_call(
        kernel,
        out_shape=jax.ShapeDtypeStruct((B, L, E), query.dtype),
        grid_spec=pltpu.PrefetchScalarGridSpec(
            num_scalar_prefetch=0,
            grid=(B, num_heads),                    # heads innermost (reduction axis)
            in_specs=in_specs,
            out_specs=o_spec,
            scratch_shapes=[pltpu.VMEM((L, E), jnp.float32)],   # full-width f32 accumulator
        ),
        compiler_params=pltpu.CompilerParams(
            dimension_semantics=("parallel", "arbitrary"),
            vmem_limit_bytes=_vmem_limit_bytes(n_act, L, E, d_head, act_itemsize)),
    )(*args)
    return out


def _reference(query, key, value, wq, bq, wk, bk, wv, bv, num_heads):
    B, L, E = query.shape
    d_head = E // num_heads
    q = (query @ wq + bq).reshape(B, L, num_heads, d_head).transpose(0, 2, 1, 3)
    k = (key @ wk + bk).reshape(B, L, num_heads, d_head).transpose(0, 2, 1, 3)
    v = (value @ wv + bv).reshape(B, L, num_heads, d_head).transpose(0, 2, 1, 3)
    s = jnp.einsum('bnld,bnsd->bnls', q, k) / math.sqrt(d_head)
    p = jax.nn.softmax(s, axis=-1)
    o = jnp.einsum('bnls,bnsd->bnld', p, v)
    return o.transpose(0, 2, 1, 3).reshape(B, L, E)


if __name__ == "__main__":
    B, L, E, H = 2, 8, 32, 4

    key0 = jax.random.PRNGKey(0)
    keys = jax.random.split(key0, 9)

    # Inputs (B, L, E)
    query = jax.random.normal(keys[0], (B, L, E), dtype=jnp.float32)
    key_in = jax.random.normal(keys[1], (B, L, E), dtype=jnp.float32)
    value = jax.random.normal(keys[2], (B, L, E), dtype=jnp.float32)

    # nn.Linear-style deterministic init: weight (out,in) ~ U(-1/sqrt(in), 1/sqrt(in)),
    # transposed to (in, out) so the kernel computes y = x @ W + b.
    bound = 1.0 / math.sqrt(E)

    def lin(kw, kb):
        w = jax.random.uniform(kw, (E, E), minval=-bound, maxval=bound, dtype=jnp.float32)
        b = jax.random.uniform(kb, (E,), minval=-bound, maxval=bound, dtype=jnp.float32)
        return w.T, b  # (in, out), (out,)

    wq, bq = lin(keys[3], keys[4])
    wk, bk = lin(keys[5], keys[6])
    wv, bv = lin(keys[7], keys[8])

    # 1) General (cross-attention) path: distinct q / k / v tensors.
    out = multihead_attention(query, key_in, value, wq, bq, wk, bk, wv, bv, H)
    out = jax.block_until_ready(out)
    ref = _reference(query, key_in, value, wq, bq, wk, bk, wv, bv, H)
    assert out.shape == (B, L, E)
    assert jnp.allclose(out, ref, atol=3e-2, rtol=3e-2), "cross-attention mismatch vs reference"

    # 2) Deduped self-attention path: the same tensor passed for q, k and v.
    out_self = multihead_attention(query, query, query, wq, bq, wk, bk, wv, bv, H)
    out_self = jax.block_until_ready(out_self)
    ref_self = _reference(query, query, query, wq, bq, wk, bk, wv, bv, H)
    assert jnp.allclose(out_self, ref_self, atol=3e-2, rtol=3e-2), "self-attention mismatch vs reference"

    print("KERNEL_OK")
</pallas_src>

<mosaic_0001>
module attributes {stable_mosaic.version = 11 : i64} {
  func.func @_mha_cross_kernel(%arg0: i32, %arg1: i32, %arg2: memref<1x8x32xf32, #tpu.memory_space<vmem>>, %arg3: memref<1x8x32xf32, #tpu.memory_space<vmem>>, %arg4: memref<1x8x32xf32, #tpu.memory_space<vmem>>, %arg5: memref<1x32x24xbf16, #tpu.memory_space<vmem>>, %arg6: memref<1x1x24xf32, #tpu.memory_space<vmem>>, %arg7: memref<1x8x32xf32, #tpu.memory_space<vmem>>, %arg8: memref<8x32xf32, #tpu.memory_space<vmem>>) attributes {dimension_semantics = [#tpu.dimension_semantics<parallel>, #tpu.dimension_semantics<arbitrary>], iteration_bounds = array<i64: 2, 4>, scalar_prefetch = 0 : i64, scratch_operands = 1 : i64, tpu.core_type = #tpu.core_type<tc>, window_params = [{transform_indices = @transform_0, window_bounds = array<i64: 1, 8, 32>}, {transform_indices = @transform_1, window_bounds = array<i64: 1, 8, 32>}, {transform_indices = @transform_2, window_bounds = array<i64: 1, 8, 32>}, {transform_indices = @transform_3, window_bounds = array<i64: 1, 32, 24>}, {transform_indices = @transform_4, window_bounds = array<i64: 1, 1, 24>}, {transform_indices = @transform_5, window_bounds = array<i64: 1, 8, 32>}]} {
    %c0 = arith.constant 0 : index
    %c0_0 = arith.constant 0 : index
    %c0_1 = arith.constant 0 : index
    %0 = vector.load %arg5[%c0, %c0_0, %c0_1] : memref<1x32x24xbf16, #tpu.memory_space<vmem>>, vector<1x32x24xbf16>
    %1 = vector.shape_cast %0 : vector<1x32x24xbf16> to vector<32x24xbf16>
    %c0_2 = arith.constant 0 : index
    %c0_3 = arith.constant 0 : index
    %c0_4 = arith.constant 0 : index
    %2 = vector.load %arg6[%c0_2, %c0_3, %c0_4] : memref<1x1x24xf32, #tpu.memory_space<vmem>>, vector<1x1x24xf32>
    %3 = vector.shape_cast %2 : vector<1x1x24xf32> to vector<1x24xf32>
    %c0_5 = arith.constant 0 : index
    %c0_6 = arith.constant 0 : index
    %c0_7 = arith.constant 0 : index
    %4 = vector.load %arg2[%c0_5, %c0_6, %c0_7] : memref<1x8x32xf32, #tpu.memory_space<vmem>>, vector<1x8x32xf32>
    %5 = vector.shape_cast %4 : vector<1x8x32xf32> to vector<8x32xf32>
    %6 = arith.truncf %5 : vector<8x32xf32> to vector<8x32xbf16>
    %7 = vector.extract_strided_slice %1 {offsets = [0, 0], sizes = [32, 8], strides = [1, 1]} : vector<32x24xbf16> to vector<32x8xbf16>
    %cst = arith.constant dense<0.000000e+00> : vector<8x8xf32>
    %8 = tpu.matmul %6, %7, %cst {dimension_numbers = #tpu.dot_dimension_numbers<[1], [0], [0], [1], [0, 0, 1, 1], [], []>} : vector<8x32xbf16>, vector<32x8xbf16>, vector<8x8xf32> -> vector<8x8xf32>
    %9 = vector.extract_strided_slice %3 {offsets = [0, 0], sizes = [1, 8], strides = [1, 1]} : vector<1x24xf32> to vector<1x8xf32>
    %10 = vector.broadcast %9 : vector<1x8xf32> to vector<8x8xf32>
    %11 = arith.addf %8, %10 : vector<8x8xf32>
    %c0_8 = arith.constant 0 : index
    %c0_9 = arith.constant 0 : index
    %c0_10 = arith.constant 0 : index
    %12 = vector.load %arg3[%c0_8, %c0_9, %c0_10] : memref<1x8x32xf32, #tpu.memory_space<vmem>>, vector<1x8x32xf32>
    %13 = vector.shape_cast %12 : vector<1x8x32xf32> to vector<8x32xf32>
    %14 = arith.truncf %13 : vector<8x32xf32> to vector<8x32xbf16>
    %15 = vector.extract_strided_slice %1 {offsets = [0, 8], sizes = [32, 8], strides = [1, 1]} : vector<32x24xbf16> to vector<32x8xbf16>
    %cst_11 = arith.constant dense<0.000000e+00> : vector<8x8xf32>
    %16 = tpu.matmul %14, %15, %cst_11 {dimension_numbers = #tpu.dot_dimension_numbers<[1], [0], [0], [1], [0, 0, 1, 1], [], []>} : vector<8x32xbf16>, vector<32x8xbf16>, vector<8x8xf32> -> vector<8x8xf32>
    %17 = vector.extract_strided_slice %3 {offsets = [0, 8], sizes = [1, 8], strides = [1, 1]} : vector<1x24xf32> to vector<1x8xf32>
    %18 = vector.broadcast %17 : vector<1x8xf32> to vector<8x8xf32>
    %19 = arith.addf %16, %18 : vector<8x8xf32>
    %c0_12 = arith.constant 0 : index
    %c0_13 = arith.constant 0 : index
    %c0_14 = arith.constant 0 : index
    %20 = vector.load %arg4[%c0_12, %c0_13, %c0_14] : memref<1x8x32xf32, #tpu.memory_space<vmem>>, vector<1x8x32xf32>
    %21 = vector.shape_cast %20 : vector<1x8x32xf32> to vector<8x32xf32>
    %22 = arith.truncf %21 : vector<8x32xf32> to vector<8x32xbf16>
    %23 = vector.extract_strided_slice %1 {offsets = [0, 16], sizes = [32, 8], strides = [1, 1]} : vector<32x24xbf16> to vector<32x8xbf16>
    %cst_15 = arith.constant dense<0.000000e+00> : vector<8x8xf32>
    %24 = tpu.matmul %22, %23, %cst_15 {dimension_numbers = #tpu.dot_dimension_numbers<[1], [0], [0], [1], [0, 0, 1, 1], [], []>} : vector<8x32xbf16>, vector<32x8xbf16>, vector<8x8xf32> -> vector<8x8xf32>
    %25 = vector.extract_strided_slice %3 {offsets = [0, 16], sizes = [1, 8], strides = [1, 1]} : vector<1x24xf32> to vector<1x8xf32>
    %26 = vector.broadcast %25 : vector<1x8xf32> to vector<8x8xf32>
    %27 = arith.addf %24, %26 : vector<8x8xf32>
    %cst_16 = arith.constant 0.353553385 : f32
    %28 = vector.broadcast %cst_16 : f32 to vector<8x8xf32>
    %29 = arith.mulf %11, %28 : vector<8x8xf32>
    %30 = arith.truncf %29 : vector<8x8xf32> to vector<8x8xbf16>
    %31 = arith.truncf %19 : vector<8x8xf32> to vector<8x8xbf16>
    %32 = arith.truncf %27 : vector<8x8xf32> to vector<8x8xbf16>
    %cst_17 = arith.constant dense<0.000000e+00> : vector<8x8xf32>
    %33 = tpu.matmul %30, %31, %cst_17 {dimension_numbers = #tpu.dot_dimension_numbers<[1], [1], [0], [0], [0, 0, 1, 0], [], []>} : vector<8x8xbf16>, vector<8x8xbf16>, vector<8x8xf32> -> vector<8x8xf32>
    %cst_18 = arith.constant dense<0xFF800000> : vector<8xf32>
    %34 = vector.multi_reduction <maximumf>, %33, %cst_18 [1] : vector<8x8xf32> to vector<8xf32>
    %35 = vector.shape_cast %34 : vector<8xf32> to vector<8x1xf32>
    %36 = vector.broadcast %35 : vector<8x1xf32> to vector<8x8xf32>
    %37 = arith.subf %33, %36 : vector<8x8xf32>
    %38 = math.exp %37 : vector<8x8xf32>
    %cst_19 = arith.constant dense<0.000000e+00> : vector<8xf32>
    %39 = vector.multi_reduction <add>, %38, %cst_19 [1] : vector<8x8xf32> to vector<8xf32>
    %40 = vector.shape_cast %39 : vector<8xf32> to vector<8x1xf32>
    %41 = tpu.reciprocal %40 {approx = true} : vector<8x1xf32> -> vector<8x1xf32>
    %42 = vector.broadcast %41 : vector<8x1xf32> to vector<8x8xf32>
    %43 = arith.mulf %38, %42 : vector<8x8xf32>
    %44 = arith.truncf %43 : vector<8x8xf32> to vector<8x8xbf16>
    %cst_20 = arith.constant dense<0.000000e+00> : vector<8x8xf32>
    %45 = tpu.matmul %44, %32, %cst_20 {dimension_numbers = #tpu.dot_dimension_numbers<[1], [0], [0], [1], [0, 0, 1, 1], [], []>} : vector<8x8xbf16>, vector<8x8xbf16>, vector<8x8xf32> -> vector<8x8xf32>
    %46 = tpu.iota {dimensions = array<i32: 0>} : vector<8x32xi32>
    %47 = tpu.iota {dimensions = array<i32: 1>} : vector<8x32xi32>
    %c8_i32 = arith.constant 8 : i32
    %48 = arith.muli %arg1, %c8_i32 : i32
    %49 = vector.broadcast %48 : i32 to vector<8x32xi32>
    %50 = arith.addi %46, %49 : vector<8x32xi32>
    %51 = arith.cmpi eq, %47, %50 : vector<8x32xi32>
    %52 = arith.extui %51 : vector<8x32xi1> to vector<8x32xi32>
    %53 = arith.sitofp %52 : vector<8x32xi32> to vector<8x32xf32>
    %cst_21 = arith.constant dense<0.000000e+00> : vector<8x32xf32>
    %54 = tpu.matmul %45, %53, %cst_21 {dimension_numbers = #tpu.dot_dimension_numbers<[1], [0], [0], [1], [0, 0, 1, 1], [], []>} : vector<8x8xf32>, vector<8x32xf32>, vector<8x32xf32> -> vector<8x32xf32>
    %c0_i32 = arith.constant 0 : i32
    %55 = arith.cmpi eq, %arg1, %c0_i32 : i32
    %56 = arith.extui %55 : i1 to i32
    %c0_i32_22 = arith.constant 0 : i32
    %57 = arith.cmpi ne, %56, %c0_i32_22 : i32
    scf.if %57 {
      %cst_28 = arith.constant 0.000000e+00 : f32
      %64 = vector.broadcast %cst_28 : f32 to vector<8x32xf32>
      %c0_29 = arith.constant 0 : index
      %c0_30 = arith.constant 0 : index
      %65 = vector.load %arg8[%c0_29, %c0_30] : memref<8x32xf32, #tpu.memory_space<vmem>>, vector<8x32xf32>
      tpu.vector_store %arg8[%c0_29, %c0_30], %64 {strides = array<i32>} : memref<8x32xf32, #tpu.memory_space<vmem>>, vector<8x32xf32>,
    } else {
    }
    %c0_23 = arith.constant 0 : index
    %c0_24 = arith.constant 0 : index
    %58 = vector.load %arg8[%c0_23, %c0_24] : memref<8x32xf32, #tpu.memory_space<vmem>>, vector<8x32xf32>
    %59 = arith.addf %58, %54 : vector<8x32xf32>
    %c0_25 = arith.constant 0 : index
    %c0_26 = arith.constant 0 : index
    %60 = vector.load %arg8[%c0_25, %c0_26] : memref<8x32xf32, #tpu.memory_space<vmem>>, vector<8x32xf32>
    tpu.vector_store %arg8[%c0_25, %c0_26], %59 {strides = array<i32>} : memref<8x32xf32, #tpu.memory_space<vmem>>, vector<8x32xf32>,
    %c3_i32 = arith.constant 3 : i32
    %61 = arith.cmpi eq, %arg1, %c3_i32 : i32
    %62 = arith.extui %61 : i1 to i32
    %c0_i32_27 = arith.constant 0 : i32
    %63 = arith.cmpi ne, %62, %c0_i32_27 : i32
    scf.if %63 {
      %c0_28 = arith.constant 0 : index
      %c0_29 = arith.constant 0 : index
      %64 = vector.load %arg8[%c0_28, %c0_29] : memref<8x32xf32, #tpu.memory_space<vmem>>, vector<8x32xf32>
      %c0_30 = arith.constant 0 : index
      %c0_31 = arith.constant 0 : index
      %c0_32 = arith.constant 0 : index
      %65 = vector.load %arg7[%c0_30, %c0_31, %c0_32] : memref<1x8x32xf32, #tpu.memory_space<vmem>>, vector<1x8x32xf32>
      %66 = vector.shape_cast %65 : vector<1x8x32xf32> to vector<8x32xf32>
      %67 = vector.shape_cast %64 : vector<8x32xf32> to vector<1x8x32xf32>
      tpu.vector_store %arg7[%c0_30, %c0_31, %c0_32], %67 {strides = array<i32>} : memref<1x8x32xf32, #tpu.memory_space<vmem>>, vector<1x8x32xf32>,
    } else {
    }
    return
  }
  func.func @transform_0(%arg0: i32, %arg1: i32) -> (i32, i32, i32) {
    %c0_i32 = arith.constant 0 : i32
    %c0_i32_0 = arith.constant 0 : i32
    %c0_i32_1 = arith.constant 0 : i32
    return %arg0, %c0_i32, %c0_i32_0 : i32, i32, i32
  }
  func.func @transform_1(%arg0: i32, %arg1: i32) -> (i32, i32, i32) {
    %c0_i32 = arith.constant 0 : i32
    %c0_i32_0 = arith.constant 0 : i32
    %c0_i32_1 = arith.constant 0 : i32
    return %arg0, %c0_i32, %c0_i32_0 : i32, i32, i32
  }
  func.func @transform_2(%arg0: i32, %arg1: i32) -> (i32, i32, i32) {
    %c0_i32 = arith.constant 0 : i32
    %c0_i32_0 = arith.constant 0 : i32
    %c0_i32_1 = arith.constant 0 : i32
    return %arg0, %c0_i32, %c0_i32_0 : i32, i32, i32
  }
  func.func @transform_3(%arg0: i32, %arg1: i32) -> (i32, i32, i32) {
    %c0_i32 = arith.constant 0 : i32
    %c0_i32_0 = arith.constant 0 : i32
    %c0_i32_1 = arith.constant 0 : i32
    return %arg1, %c0_i32, %c0_i32_0 : i32, i32, i32
  }
  func.func @transform_4(%arg0: i32, %arg1: i32) -> (i32, i32, i32) {
    %c0_i32 = arith.constant 0 : i32
    %c0_i32_0 = arith.constant 0 : i32
    %c0_i32_1 = arith.constant 0 : i32
    return %arg1, %c0_i32, %c0_i32_0 : i32, i32, i32
  }
  func.func @transform_5(%arg0: i32, %arg1: i32) -> (i32, i32, i32) {
    %c0_i32 = arith.constant 0 : i32
    %c0_i32_0 = arith.constant 0 : i32
    %c0_i32_1 = arith.constant 0 : i32
    return %arg0, %c0_i32, %c0_i32_0 : i32, i32, i32
  }
}

</mosaic_0001>

<llo_original>
// kernel: tpu_custom_call.1
$region0: #{tpu_custom_call.1}
  #allocation0 [shape = 'u32[]', space=smem, size = 0x4, offset = 0x4, fixed_abs, tag = 'smem constant byte address 0x4 - core index']
  #allocation1 [shape = 'u32[144,128]{1,0:T(1,128)}', space=vmem, size = 0x12000, scoped, tag = 'internal scratch']
  #allocation2 [shape = 'f32[8,32]{1,0:T(8,128)}', space=vmem, size = 0x1000, scoped, tag = 'scratch operand']
  %s0 = inlined_call_operand.vmem [shape: f32[2,8,32], index: 0, kind: input, shape index: {}]
  %s1 = inlined_call_operand.vmem [shape: f32[2,8,32], index: 1, kind: input, shape index: {}]
  %s2 = inlined_call_operand.vmem [shape: f32[2,8,32], index: 2, kind: input, shape index: {}]
  %s3 = inlined_call_operand.vmem [shape: bf16[4,32,24], index: 3, kind: input, shape index: {}]
  %s4 = inlined_call_operand.vmem [shape: f32[4,1,24], index: 4, kind: input, shape index: {}]
  %s5 = inlined_call_operand.hbm [shape: f32[2,8,32], index: 5, kind: output, shape index: {}]
  %s6 = sld [smem:[#allocation0]]
  $region61: #{tpu_custom_call.1} parent=0
    _
  %s8 = ssub.s32 1, %s6
  %s9 = scalar_select 0, %s8, %s6
  $region1: #{tpu_custom_call.1} parent=0
    #allocation3 [shape = 'u8[8192]{0}', space=vmem, size = 0x2000, scoped, tag = 'output window, operand 0']
    #allocation4 [shape = 's32[2]{0}', space=sflag, size = 0x8, scoped, tag = 'scoped memory for tpu_custom_call.1']
    %10 = vsyncpa [#allocation4], 0
    %s11 = scalar_lea.sflag [#allocation4], 1
    %12 = vsyncpa %s11, 0
    loop: start=0, step=1, limit=10
    $region2: #{tpu_custom_call.1} parent=1 // loop_pre_header
      _
    $region3: #{tpu_custom_call.1} parent=1 // loop_header
      %s14 = sphi 0, %s18
      %p15 = scmp.ge.s32.totalorder %s14, 10
      %s21 = sphi 0, %s33
      %s22 = sphi 0, %s29
      %s23 = sphi 0, %s21
      %s24 = sphi 0, %s22
      %s25 = sphi 0, %s23
      %s26 = sphi 0, %s24
      %s36 = sphi 0, %s38
      %s39 = sphi 0, %s36
      %s40 = sphi 0, %s39
      %s56 = sphi 0, %s40
      %s62 = sphi 0, %s64
      %s65 = sphi 0, %s62
      %s66 = sphi 0, %s65
      %s82 = sphi 0, %s66
      %s88 = sphi 0, %s90
      %s91 = sphi 0, %s88
      %s92 = sphi 0, %s91
      %s108 = sphi 0, %s92
      %s114 = sphi 0, %s116
      %s117 = sphi 0, %s114
      %s118 = sphi 0, %s117
      %s134 = sphi 0, %s118
      %s140 = sphi 0, %s142
      %s143 = sphi 0, %s140
      %s144 = sphi 0, %s143
      %s160 = sphi 0, %s144
      %s166 = sphi 0, %s168
      %s169 = sphi 0, %s166
      %s170 = sphi 0, %s169
      %s186 = sphi 0, %s170
    $region4: #{tpu_custom_call.1} parent=1 // loop_header_branch
      %17 = sbr.rel (%p15) target = $region8
    $region5: #{tpu_custom_call.1} parent=1 // loop_body
      %s19 = ssub.s32 %s14, 1
      %s20 = ssub.s32 %s14, 2
      %s27 = sadd.s32 1, %s22
      %p28 = scmp.ge.s32.totalorder %s27, 4
      %s29 = scalar_select %p28, 0, %s27
      %s30 = sadd.s32 1, %s21
      %s31 = scalar_select %p28, %s30, %s21
      %p32 = scmp.ge.s32.totalorder %s31, 2
      %s33 = scalar_select %p32, 0, %s31
      %s34 = ssub.s32 %s21, %s33
      %p35 = scmp.eq.s32.totalorder %s34, 0
      %s37 = sadd.s32 %s36, 1
      %s38 = scalar_select %p35, %s36, %s37
      %p41 = pneg %p35
      %p42 = scmp.eq.s32.totalorder %s14, 7
      %p43 = por %p41, %p42
      %p44 = scmp.ne.s32.totalorder %s36, %s39
      %p45 = scmp.eq.s32.totalorder %s14, 0
      %p46 = por %p44, %p45
      %p47 = scmp.ne.s32.totalorder %s36, %s39
      %p48 = scmp.eq.s32.totalorder %s19, 7
      %p49 = por %p47, %p48
      %p50 = scmp.ne.s32.totalorder %s39, %s40
      %p51 = scmp.eq.s32.totalorder %s19, 0
      %p52 = por %p50, %p51
      %p53 = scmp.ne.s32.totalorder %s39, %s40
      %p54 = scmp.eq.s32.totalorder %s20, 7
      %p55 = por %p53, %p54
      %p57 = scmp.ne.s32.totalorder %s40, %s56
      %p58 = scmp.eq.s32.totalorder %s20, 0
      %p59 = por %p57, %p58
      %s60 = ssub.s32 %s21, %s33
      %p61 = scmp.eq.s32.totalorder %s60, 0
      %s63 = sadd.s32 %s62, 1
      %s64 = scalar_select %p61, %s62, %s63
      %p67 = pneg %p61
      %p68 = scmp.eq.s32.totalorder %s14, 7
      %p69 = por %p67, %p68
      %p70 = scmp.ne.s32.totalorder %s62, %s65
      %p71 = scmp.eq.s32.totalorder %s14, 0
      %p72 = por %p70, %p71
      %p73 = scmp.ne.s32.totalorder %s62, %s65
      %p74 = scmp.eq.s32.totalorder %s19, 7
      %p75 = por %p73, %p74
      %p76 = scmp.ne.s32.totalorder %s65, %s66
      %p77 = scmp.eq.s32.totalorder %s19, 0
      %p78 = por %p76, %p77
      %p79 = scmp.ne.s32.totalorder %s65, %s66
      %p80 = scmp.eq.s32.totalorder %s20, 7
      %p81 = por %p79, %p80
      %p83 = scmp.ne.s32.totalorder %s66, %s82
      %p84 = scmp.eq.s32.totalorder %s20, 0
      %p85 = por %p83, %p84
      %s86 = ssub.s32 %s21, %s33
      %p87 = scmp.eq.s32.totalorder %s86, 0
      %s89 = sadd.s32 %s88, 1
      %s90 = scalar_select %p87, %s88, %s89
      %p93 = pneg %p87
      %p94 = scmp.eq.s32.totalorder %s14, 7
      %p95 = por %p93, %p94
      %p96 = scmp.ne.s32.totalorder %s88, %s91
      %p97 = scmp.eq.s32.totalorder %s14, 0
      %p98 = por %p96, %p97
      %p99 = scmp.ne.s32.totalorder %s88, %s91
      %p100 = scmp.eq.s32.totalorder %s19, 7
      %p101 = por %p99, %p100
      %p102 = scmp.ne.s32.totalorder %s91, %s92
      %p103 = scmp.eq.s32.totalorder %s19, 0
      %p104 = por %p102, %p103
      %p105 = scmp.ne.s32.totalorder %s91, %s92
      %p106 = scmp.eq.s32.totalorder %s20, 7
      %p107 = por %p105, %p106
      %p109 = scmp.ne.s32.totalorder %s92, %s108
      %p110 = scmp.eq.s32.totalorder %s20, 0
      %p111 = por %p109, %p110
      %s112 = ssub.s32 %s22, %s29
      %p113 = scmp.eq.s32.totalorder %s112, 0
      %s115 = sadd.s32 %s114, 1
      %s116 = scalar_select %p113, %s114, %s115
      %p119 = pneg %p113
      %p120 = scmp.eq.s32.totalorder %s14, 7
      %p121 = por %p119, %p120
      %p122 = scmp.ne.s32.totalorder %s114, %s117
      %p123 = scmp.eq.s32.totalorder %s14, 0
      %p124 = por %p122, %p123
      %p125 = scmp.ne.s32.totalorder %s114, %s117
      %p126 = scmp.eq.s32.totalorder %s19, 7
      %p127 = por %p125, %p126
      %p128 = scmp.ne.s32.totalorder %s117, %s118
      %p129 = scmp.eq.s32.totalorder %s19, 0
      %p130 = por %p128, %p129
      %p131 = scmp.ne.s32.totalorder %s117, %s118
      %p132 = scmp.eq.s32.totalorder %s20, 7
      %p133 = por %p131, %p132
      %p135 = scmp.ne.s32.totalorder %s118, %s134
      %p136 = scmp.eq.s32.totalorder %s20, 0
      %p137 = por %p135, %p136
      %s138 = ssub.s32 %s22, %s29
      %p139 = scmp.eq.s32.totalorder %s138, 0
      %s141 = sadd.s32 %s140, 1
      %s142 = scalar_select %p139, %s140, %s141
      %p145 = pneg %p139
      %p146 = scmp.eq.s32.totalorder %s14, 7
      %p147 = por %p145, %p146
      %p148 = scmp.ne.s32.totalorder %s140, %s143
      %p149 = scmp.eq.s32.totalorder %s14, 0
      %p150 = por %p148, %p149
      %p151 = scmp.ne.s32.totalorder %s140, %s143
      %p152 = scmp.eq.s32.totalorder %s19, 7
      %p153 = por %p151, %p152
      %p154 = scmp.ne.s32.totalorder %s143, %s144
      %p155 = scmp.eq.s32.totalorder %s19, 0
      %p156 = por %p154, %p155
      %p157 = scmp.ne.s32.totalorder %s143, %s144
      %p158 = scmp.eq.s32.totalorder %s20, 7
      %p159 = por %p157, %p158
      %p161 = scmp.ne.s32.totalorder %s144, %s160
      %p162 = scmp.eq.s32.totalorder %s20, 0
      %p163 = por %p161, %p162
      %s164 = ssub.s32 %s21, %s33
      %p165 = scmp.eq.s32.totalorder %s164, 0
      %s167 = sadd.s32 %s166, 1
      %s168 = scalar_select %p165, %s166, %s167
      %p171 = pneg %p165
      %p172 = scmp.eq.s32.totalorder %s14, 7
      %p173 = por %p171, %p172
      %p174 = scmp.ne.s32.totalorder %s166, %s169
      %p175 = scmp.eq.s32.totalorder %s14, 0
      %p176 = por %p174, %p175
      %p177 = scmp.ne.s32.totalorder %s166, %s169
      %p178 = scmp.eq.s32.totalorder %s19, 7
      %p179 = por %p177, %p178
      %p180 = scmp.ne.s32.totalorder %s169, %s170
      %p181 = scmp.eq.s32.totalorder %s19, 0
      %p182 = por %p180, %p181
      %p183 = scmp.ne.s32.totalorder %s169, %s170
      %p184 = scmp.eq.s32.totalorder %s20, 7
      %p185 = por %p183, %p184
      %p187 = scmp.ne.s32.totalorder %s170, %s186
      %p188 = scmp.eq.s32.totalorder %s20, 0
      %p189 = por %p187, %p188
      %p190 = scmp.le.s32.totalorder 1, %s14
      %p191 = scmp.lt.s32.totalorder %s14, 9
      %p192 = pnand %p190, %p191
      %p193 = pneg %p192
      // Predicated region
      $region9: #{tpu_custom_call.1} parent=5 // pred_check
        _
      $region10: #{tpu_custom_call.1} parent=5 // pred_check_branch
        %195 = sbr.rel (%p192) target = $region12
      $region11: #{tpu_custom_call.1} parent=5 // pred_region
        %s196 = ssub.s32 %s14, 1
      $region12: #{tpu_custom_call.1} parent=5 // pred_fallthru
        _
      %p197 = scmp.lt.s32.totalorder %s14, 8
      // Predicated region
      $region13: #{tpu_custom_call.1} parent=5 // pred_check
        %p198 = pneg %p197
      $region14: #{tpu_custom_call.1} parent=5 // pred_check_branch
        %200 = sbr.rel (%p198) target = $region16
      $region15: #{tpu_custom_call.1} parent=5 // pred_region
        // Predicated region
        $region17: #{tpu_custom_call.1} parent=15 // pred_check
          %p201 = pneg %p46
        $region18: #{tpu_custom_call.1} parent=15 // pred_check_branch
          %203 = sbr.rel (%p201) target = $region20
        $region19: #{tpu_custom_call.1} parent=15 // pred_region
          %p204 = scmp.lt.s32.totalorder %s21, 1
          %s205 = scalar_select %p204, %s21, 1
          %s206 = smul.addr %s205, 8
          %s207 = scalar_lea.vmem %s0, %s206
        $region20: #{tpu_custom_call.1} parent=15 // pred_fallthru
          _
        // Predicated region
        $region21: #{tpu_custom_call.1} parent=15 // pred_check
          %p208 = pneg %p72
        $region22: #{tpu_custom_call.1} parent=15 // pred_check_branch
          %210 = sbr.rel (%p208) target = $region24
        $region23: #{tpu_custom_call.1} parent=15 // pred_region
          %p211 = scmp.lt.s32.totalorder %s21, 1
          %s212 = scalar_select %p211, %s21, 1
          %s213 = smul.addr %s212, 8
          %s214 = scalar_lea.vmem %s1, %s213
        $region24: #{tpu_custom_call.1} parent=15 // pred_fallthru
          _
        // Predicated region
        $region25: #{tpu_custom_call.1} parent=15 // pred_check
          %p215 = pneg %p98
        $region26: #{tpu_custom_call.1} parent=15 // pred_check_branch
          %217 = sbr.rel (%p215) target = $region28
        $region27: #{tpu_custom_call.1} parent=15 // pred_region
          %p218 = scmp.lt.s32.totalorder %s21, 1
          %s219 = scalar_select %p218, %s21, 1
          %s220 = smul.addr %s219, 8
          %s221 = scalar_lea.vmem %s2, %s220
        $region28: #{tpu_custom_call.1} parent=15 // pred_fallthru
          _
        // Predicated region
        $region29: #{tpu_custom_call.1} parent=15 // pred_check
          %p222 = pneg %p124
        $region30: #{tpu_custom_call.1} parent=15 // pred_check_branch
          %224 = sbr.rel (%p222) target = $region32
        $region31: #{tpu_custom_call.1} parent=15 // pred_region
          %p225 = scmp.lt.s32.totalorder %s22, 3
          %s226 = scalar_select %p225, %s22, 3
          %s227 = smul.addr %s226, 4
          %s228 = smul.addr %s227, 4
          %s229 = scalar_lea.vmem %s3, %s228
        $region32: #{tpu_custom_call.1} parent=15 // pred_fallthru
          _
        // Predicated region
        $region33: #{tpu_custom_call.1} parent=15 // pred_check
          %p230 = pneg %p150
        $region34: #{tpu_custom_call.1} parent=15 // pred_check_branch
          %232 = sbr.rel (%p230) target = $region36
        $region35: #{tpu_custom_call.1} parent=15 // pred_region
          %p233 = scmp.lt.s32.totalorder %s22, 3
          %s234 = scalar_select %p233, %s22, 3
          %s235 = scalar_lea.vmem %s4, %s234
        $region36: #{tpu_custom_call.1} parent=15 // pred_fallthru
          _
      $region16: #{tpu_custom_call.1} parent=5 // pred_fallthru
        _
      %p236 = scmp.le.s32.totalorder 1, %s14
      %p237 = scmp.lt.s32.totalorder %s14, 9
      %p238 = pnand %p236, %p237
      %p239 = pneg %p238
      // Predicated region
      $region37: #{tpu_custom_call.1} parent=5 // pred_check
        _
      $region38: #{tpu_custom_call.1} parent=5 // pred_check_branch
        %241 = sbr.rel (%p238) target = $region40
      $region39: #{tpu_custom_call.1} parent=5 // pred_region
        %s242 = ssub.s32 %s14, 1
        %p243 = scmp.lt.s32.totalorder %s23, 1
        %s244 = scalar_select %p243, %s23, 1
        %s245 = smul.addr %s244, 8
        %s246 = scalar_lea.vmem %s0, %s245
        %p247 = pneg %p52
        %p248 = pneg %p49
        %p249 = scmp.lt.s32.totalorder %s23, 1
        %s250 = scalar_select %p249, %s23, 1
        %s251 = smul.addr %s250, 8
        %s252 = scalar_lea.vmem %s1, %s251
        %p253 = pneg %p78
        %p254 = pneg %p75
        %p255 = scmp.lt.s32.totalorder %s23, 1
        %s256 = scalar_select %p255, %s23, 1
        %s257 = smul.addr %s256, 8
        %s258 = scalar_lea.vmem %s2, %s257
        %p259 = pneg %p104
        %p260 = pneg %p101
        %p261 = scmp.lt.s32.totalorder %s24, 3
        %s262 = scalar_select %p261, %s24, 3
        %s263 = smul.addr %s262, 4
        %s264 = smul.addr %s263, 4
        %s265 = scalar_lea.vmem %s3, %s264
        %p266 = pneg %p130
        %p267 = pneg %p127
        %p268 = scmp.lt.s32.totalorder %s24, 3
        %s269 = scalar_select %p268, %s24, 3
        %s270 = scalar_lea.vmem %s4, %s269
        %p271 = pneg %p156
        %p272 = pneg %p153
        %p273 = pneg %p182
        %p274 = pneg %p179
        %s275 = sand.u32 %s169, 1
        %s276 = scalar_lea.sflag [#allocation4], %s275
        %s277 = sand.u32 %s169, 1
        %s278 = smul.addr %s277, 8
        %s279 = scalar_lea.vmem [#allocation3], %s278
        %p280 = scmp.lt.s32.totalorder %s23, 1
        %s281 = scalar_select %p280, %s23, 1
        %s282 = smul.addr %s281, 8
        %s283 = scalar_lea.vmem %s0, %s282
        %p284 = scmp.lt.s32.totalorder %s23, 1
        %s285 = scalar_select %p284, %s23, 1
        %s286 = smul.addr %s285, 8
        %s287 = scalar_lea.vmem %s1, %s286
        %p288 = scmp.lt.s32.totalorder %s23, 1
        %s289 = scalar_select %p288, %s23, 1
        %s290 = smul.addr %s289, 8
        %s291 = scalar_lea.vmem %s2, %s290
        %p292 = scmp.lt.s32.totalorder %s24, 3
        %s293 = scalar_select %p292, %s24, 3
        %s294 = smul.addr %s293, 4
        %s295 = smul.addr %s294, 4
        %s296 = scalar_lea.vmem %s3, %s295
        %p297 = scmp.lt.s32.totalorder %s24, 3
        %s298 = scalar_select %p297, %s24, 3
        %s299 = scalar_lea.vmem %s4, %s298
        %v301 = vld [vmem:[%s296] sm:$0xf]
        %v302 = vld [vmem:[%s296 + $0x4] sm:$0xf]
        %v303 = vld [vmem:[%s296 + $0x8] sm:$0xf]
        %v304 = vld [vmem:[%s296 + $0xc] sm:$0xf]
        %v305 = vld [vmem:[%s299] sm:$0x1]
        %v306 = vld [vmem:[%s283] sm:$0xff]
        %v307 = vpack.c.bf16 %v306, %v306
        %v309 = vlaneseq
        %v310 = vshrl.u32 %v309, 7
        %v311 = vsub.s32 0, %v310
        %v312 = vrot.slane %v305, %v311
        %v318 = vunpack.c.l.b16 %v301
        %v319 = vunpack.c.l.b16 %v302
        %v320 = vunpack.c.l.b16 %v303
        %v321 = vunpack.c.l.b16 %v304
        %v322 = vpack.c.b16 %v319, %v318
        %v323 = vpack.c.b16 %v321, %v320
        %vm326 = vcmask 261120
        %v328 = vsel %vm326, %v307, 0
        %330 = vmatprep.subr.bf16.mxu0 0
        %331 = vmatpush1.bf16.msra.mxu0 %v322
        %332 = vmatprep.subr.bf16.mxu0 0
        %333 = vmatpush1.bf16.msra.mxu0 %v323
        %334 = vmatprep.subr.bf16.mxu0 0
        %335 = vmatpush1.bf16.msra.mxu0 0
        %336 = vmatprep.subr.bf16.mxu0 0
        %337 = vmatpush1.bf16.msra.mxu0 0
        %338 = vmatprep.subr.bf16.mxu0 0
        %339 = vmatpush1.bf16.msra.mxu0 0
        %340 = vmatprep.subr.bf16.mxu0 0
        %341 = vmatpush1.bf16.msra.mxu0 0
        %342 = vmatprep.subr.bf16.mxu0 0
        %343 = vmatpush1.bf16.msra.mxu0 0
        %344 = vmatprep.subr.bf16.mxu0 0
        %345 = vmatpush1.bf16.msra.mxu0 0
        %346 = vmatprep.subr.bf16.mxu0 0
        %347 = vmatpush1.bf16.msra.mxu0 0
        %348 = vmatprep.subr.bf16.mxu0 0
        %349 = vmatpush1.bf16.msra.mxu0 0
        %350 = vmatprep.subr.bf16.mxu0 0
        %351 = vmatpush1.bf16.msra.mxu0 0
        %352 = vmatprep.subr.bf16.mxu0 0
        %353 = vmatpush1.bf16.msra.mxu0 0
        %354 = vmatprep.subr.bf16.mxu0 0
        %355 = vmatpush1.bf16.msra.mxu0 0
        %356 = vmatprep.subr.bf16.mxu0 0
        %357 = vmatpush1.bf16.msra.mxu0 0
        %358 = vmatprep.subr.bf16.mxu0 0
        %359 = vmatpush1.bf16.msra.mxu0 0
        %360 = vmatprep.subr.bf16.mxu0 0
        %361 = vmatpush1.bf16.msra.mxu0 0
        %362 = vmatprep.mubr.bf16.mxu0 0
        %363 = vmatmul.mubr.bf16.gmra.mrb[0].mxu0 %v328
        %v364 = vpop.f32.mrb[0].mxu0
        %v365 = vadd.f32 %v312, %v364
        %v366 = vpop.f32.mrb[0].mxu0
        %v367 = vpop.f32.mrb[0].mxu0
        %v368 = vpop.f32.mrb[0].mxu0
        %369 = vdwg.mxu0
        %v370 = vld [vmem:[%s287] sm:$0xff]
        %v371 = vpack.c.bf16 %v370, %v370
        %372 = vrot.lane.b32.xlu0 %v322, 120
        %v373 = vpop.permute.xlu0 %372
        %374 = vrot.lane.b32.xlu0 %v323, 120
        %v375 = vpop.permute.xlu0 %374
        %378 = vrot.lane.b32.xlu0 %v312, 120
        %v379 = vpop.permute.xlu0 %378
        %v382 = vsel %vm326, %v371, 0
        %384 = vmatprep.subr.bf16.mxu0 0
        %385 = vmatpush1.bf16.msra.mxu0 %v373
        %386 = vmatprep.subr.bf16.mxu0 0
        %387 = vmatpush1.bf16.msra.mxu0 %v375
        %388 = vmatprep.subr.bf16.mxu0 0
        %389 = vmatpush1.bf16.msra.mxu0 0
        %390 = vmatprep.subr.bf16.mxu0 0
        %391 = vmatpush1.bf16.msra.mxu0 0
        %392 = vmatprep.subr.bf16.mxu0 0
        %393 = vmatpush1.bf16.msra.mxu0 0
        %394 = vmatprep.subr.bf16.mxu0 0
        %395 = vmatpush1.bf16.msra.mxu0 0
        %396 = vmatprep.subr.bf16.mxu0 0
        %397 = vmatpush1.bf16.msra.mxu0 0
        %398 = vmatprep.subr.bf16.mxu0 0
        %399 = vmatpush1.bf16.msra.mxu0 0
        %400 = vmatprep.subr.bf16.mxu0 0
        %401 = vmatpush1.bf16.msra.mxu0 0
        %402 = vmatprep.subr.bf16.mxu0 0
        %403 = vmatpush1.bf16.msra.mxu0 0
        %404 = vmatprep.subr.bf16.mxu0 0
        %405 = vmatpush1.bf16.msra.mxu0 0
        %406 = vmatprep.subr.bf16.mxu0 0
        %407 = vmatpush1.bf16.msra.mxu0 0
        %408 = vmatprep.subr.bf16.mxu0 0
        %409 = vmatpush1.bf16.msra.mxu0 0
        %410 = vmatprep.subr.bf16.mxu0 0
        %411 = vmatpush1.bf16.msra.mxu0 0
        %412 = vmatprep.subr.bf16.mxu0 0
        %413 = vmatpush1.bf16.msra.mxu0 0
        %414 = vmatprep.subr.bf16.mxu0 0
        %415 = vmatpush1.bf16.msra.mxu0 0
        %416 = vmatprep.mubr.bf16.mxu0 0
        %417 = vmatmul.mubr.bf16.gmra.mrb[0].mxu0 %v382
        %v418 = vpop.f32.mrb[0].mxu0
        %v419 = vadd.f32 %v379, %v418
        %v420 = vpop.f32.mrb[0].mxu0
        %v421 = vpop.f32.mrb[0].mxu0
        %v422 = vpop.f32.mrb[0].mxu0
        %423 = vdwg.mxu0
        %v424 = vld [vmem:[%s291] sm:$0xff]
        %v425 = vpack.c.bf16 %v424, %v424
        %426 = vrot.lane.b32.xlu0 %v322, 112
        %v427 = vpop.permute.xlu0 %426
        %428 = vrot.lane.b32.xlu0 %v323, 112
        %v429 = vpop.permute.xlu0 %428
        %432 = vrot.lane.b32.xlu0 %v312, 112
        %v433 = vpop.permute.xlu0 %432
        %v436 = vsel %vm326, %v425, 0
        %438 = vmatprep.subr.bf16.mxu0 0
        %439 = vmatpush1.bf16.msra.mxu0 %v427
        %440 = vmatprep.subr.bf16.mxu0 0
        %441 = vmatpush1.bf16.msra.mxu0 %v429
        %442 = vmatprep.subr.bf16.mxu0 0
        %443 = vmatpush1.bf16.msra.mxu0 0
        %444 = vmatprep.subr.bf16.mxu0 0
        %445 = vmatpush1.bf16.msra.mxu0 0
        %446 = vmatprep.subr.bf16.mxu0 0
        %447 = vmatpush1.bf16.msra.mxu0 0
        %448 = vmatprep.subr.bf16.mxu0 0
        %449 = vmatpush1.bf16.msra.mxu0 0
        %450 = vmatprep.subr.bf16.mxu0 0
        %451 = vmatpush1.bf16.msra.mxu0 0
        %452 = vmatprep.subr.bf16.mxu0 0
        %453 = vmatpush1.bf16.msra.mxu0 0
        %454 = vmatprep.subr.bf16.mxu0 0
        %455 = vmatpush1.bf16.msra.mxu0 0
        %456 = vmatprep.subr.bf16.mxu0 0
        %457 = vmatpush1.bf16.msra.mxu0 0
        %458 = vmatprep.subr.bf16.mxu0 0
        %459 = vmatpush1.bf16.msra.mxu0 0
        %460 = vmatprep.subr.bf16.mxu0 0
        %461 = vmatpush1.bf16.msra.mxu0 0
        %462 = vmatprep.subr.bf16.mxu0 0
        %463 = vmatpush1.bf16.msra.mxu0 0
        %464 = vmatprep.subr.bf16.mxu0 0
        %465 = vmatpush1.bf16.msra.mxu0 0
        %466 = vmatprep.subr.bf16.mxu0 0
        %467 = vmatpush1.bf16.msra.mxu0 0
        %468 = vmatprep.subr.bf16.mxu0 0
        %469 = vmatpush1.bf16.msra.mxu0 0
        %470 = vmatprep.mubr.bf16.mxu0 0
        %471 = vmatmul.mubr.bf16.gmra.mrb[0].mxu0 %v436
        %v472 = vpop.f32.mrb[0].mxu0
        %v473 = vadd.f32 %v433, %v472
        %v474 = vpop.f32.mrb[0].mxu0
        %v475 = vpop.f32.mrb[0].mxu0
        %v476 = vpop.f32.mrb[0].mxu0
        %477 = vdwg.mxu0
        %v478 = vmul.f32 %v365, 0.35355338
        %v479 = vpack.c.bf16 %v478, %v478
        %v480 = vpack.c.bf16 %v419, %v419
        %v481 = vpack.c.bf16 %v473, %v473
        %vm482 = vcmask 64512
        %v484 = vsel %vm482, %v479, 0
        %v487 = vsel %vm482, %v480, 0
        %489 = vmatprep.subr.bf16.mxu0 0
        %490 = vmatpush1.bf16.xpose.msra.mxu0 %v487
        %491 = vmatprep.subr.bf16.mxu0 0
        %492 = vmatpush1.bf16.xpose.msra.mxu0 0
        %493 = vmatprep.subr.bf16.mxu0 0
        %494 = vmatpush1.bf16.xpose.msra.mxu0 0
        %495 = vmatprep.subr.bf16.mxu0 0
        %496 = vmatpush1.bf16.xpose.msra.mxu0 0
        %497 = vmatprep.subr.bf16.mxu0 0
        %498 = vmatpush1.bf16.xpose.msra.mxu0 0
        %499 = vmatprep.subr.bf16.mxu0 0
        %500 = vmatpush1.bf16.xpose.msra.mxu0 0
        %501 = vmatprep.subr.bf16.mxu0 0
        %502 = vmatpush1.bf16.xpose.msra.mxu0 0
        %503 = vmatprep.subr.bf16.mxu0 0
        %504 = vmatpush1.bf16.xpose.msra.mxu0 0
        %505 = vmatprep.subr.bf16.mxu0 0
        %506 = vmatpush1.bf16.xpose.msra.mxu0 0
        %507 = vmatprep.subr.bf16.mxu0 0
        %508 = vmatpush1.bf16.xpose.msra.mxu0 0
        %509 = vmatprep.subr.bf16.mxu0 0
        %510 = vmatpush1.bf16.xpose.msra.mxu0 0
        %511 = vmatprep.subr.bf16.mxu0 0
        %512 = vmatpush1.bf16.xpose.msra.mxu0 0
        %513 = vmatprep.subr.bf16.mxu0 0
        %514 = vmatpush1.bf16.xpose.msra.mxu0 0
        %515 = vmatprep.subr.bf16.mxu0 0
        %516 = vmatpush1.bf16.xpose.msra.mxu0 0
        %517 = vmatprep.subr.bf16.mxu0 0
        %518 = vmatpush1.bf16.xpose.msra.mxu0 0
        %519 = vmatprep.subr.bf16.mxu0 0
        %520 = vmatpush1.bf16.xpose.msra.mxu0 0
        %521 = vmatprep.mubr.bf16.mxu0 0
        %522 = vmatmul.mubr.bf16.gmra.mrb[0].mxu0 %v484
        %v523 = vpop.f32.mrb[0].mxu0
        %v524 = vadd.f32 0.0, %v523
        %v525 = vpop.f32.mrb[0].mxu0
        %v526 = vpop.f32.mrb[0].mxu0
        %v527 = vpop.f32.mrb[0].mxu0
        %528 = vdwg.mxu0
        %v529 = vsel %vm482, %v524, -inf
        %530 = vmax.xlane.f32.xlu0 %v529
        %v531 = vpop.xlane.xlu0 %530
        %v532 = vsub.f32 %v524, %v531
        %v533 = vmul.f32 %v532, 1.442695
        %v534 = vpow.pop %v533
        %v535 = vsel %vm482, %v534, 0.0
        %536 = vadd.xlane.f32.xlu0 %v535
        %v537 = vpop.xlane.xlu0 %536
        %v538 = vrcp.pop %v537
        %v539 = vmul.f32 %v534, %v538
        %v540 = vpack.c.bf16 %v539, %v539
        %v542 = vsel %vm482, %v540, 0
        %vm544 = vcmask 1043456
        %v546 = vsel %vm544, %v481, 0
        %548 = vmatprep.subr.bf16.mxu0 0
        %549 = vmatpush1.bf16.msra.mxu0 %v546
        %550 = vmatprep.subr.bf16.mxu0 0
        %551 = vmatpush1.bf16.msra.mxu0 0
        %552 = vmatprep.subr.bf16.mxu0 0
        %553 = vmatpush1.bf16.msra.mxu0 0
        %554 = vmatprep.subr.bf16.mxu0 0
        %555 = vmatpush1.bf16.msra.mxu0 0
        %556 = vmatprep.subr.bf16.mxu0 0
        %557 = vmatpush1.bf16.msra.mxu0 0
        %558 = vmatprep.subr.bf16.mxu0 0
        %559 = vmatpush1.bf16.msra.mxu0 0
        %560 = vmatprep.subr.bf16.mxu0 0
        %561 = vmatpush1.bf16.msra.mxu0 0
        %562 = vmatprep.subr.bf16.mxu0 0
        %563 = vmatpush1.bf16.msra.mxu0 0
        %564 = vmatprep.subr.bf16.mxu0 0
        %565 = vmatpush1.bf16.msra.mxu0 0
        %566 = vmatprep.subr.bf16.mxu0 0
        %567 = vmatpush1.bf16.msra.mxu0 0
        %568 = vmatprep.subr.bf16.mxu0 0
        %569 = vmatpush1.bf16.msra.mxu0 0
        %570 = vmatprep.subr.bf16.mxu0 0
        %571 = vmatpush1.bf16.msra.mxu0 0
        %572 = vmatprep.subr.bf16.mxu0 0
        %573 = vmatpush1.bf16.msra.mxu0 0
        %574 = vmatprep.subr.bf16.mxu0 0
        %575 = vmatpush1.bf16.msra.mxu0 0
        %576 = vmatprep.subr.bf16.mxu0 0
        %577 = vmatpush1.bf16.msra.mxu0 0
        %578 = vmatprep.subr.bf16.mxu0 0
        %579 = vmatpush1.bf16.msra.mxu0 0
        %580 = vmatprep.mubr.bf16.mxu0 0
        %581 = vmatmul.mubr.bf16.gmra.mrb[0].mxu0 %v542
        %v582 = vpop.f32.mrb[0].mxu0
        %v583 = vadd.f32 0.0, %v582
        %v584 = vpop.f32.mrb[0].mxu0
        %v585 = vpop.f32.mrb[0].mxu0
        %v586 = vpop.f32.mrb[0].mxu0
        %587 = vdwg.mxu0
        %v588 = vlaneseq
        %v589 = vshrl.u32 %v588, 7
        %v590 = vlaneseq
        %v591 = vand.u32 %v590, 127
        %s592 = smul.u32 %s24, 8
        %v593 = vstv %s592
        %v594 = vadd.s32 %v589, %v593
        %vm595 = vcmp.eq.s32.totalorder %v591, %v594
        %v596 = vsel %vm595, 1, 0
        %v597 = vcvt.s32.f32 %v596
        %v599 = vsel %vm482, %v583, 0
        %601 = vmatprep.subr.mxu0 0.0
        %602 = vmatpush1.msra.mxu0 %v597
        %603 = vmatprep.subr.mxu0 0.0
        %604 = vmatpush1.msra.mxu0 0.0
        %605 = vmatprep.subr.mxu0 0.0
        %606 = vmatpush1.msra.mxu0 0.0
        %607 = vmatprep.subr.mxu0 0.0
        %608 = vmatpush1.msra.mxu0 0.0
        %609 = vmatprep.subr.mxu0 0.0
        %610 = vmatpush1.msra.mxu0 0.0
        %611 = vmatprep.subr.mxu0 0.0
        %612 = vmatpush1.msra.mxu0 0.0
        %613 = vmatprep.subr.mxu0 0.0
        %614 = vmatpush1.msra.mxu0 0.0
        %615 = vmatprep.subr.mxu0 0.0
        %616 = vmatpush1.msra.mxu0 0.0
        %617 = vmatprep.subr.mxu0 0.0
        %618 = vmatpush1.msra.mxu0 0.0
        %619 = vmatprep.subr.mxu0 0.0
        %620 = vmatpush1.msra.mxu0 0.0
        %621 = vmatprep.subr.mxu0 0.0
        %622 = vmatpush1.msra.mxu0 0.0
        %623 = vmatprep.subr.mxu0 0.0
        %624 = vmatpush1.msra.mxu0 0.0
        %625 = vmatprep.subr.mxu0 0.0
        %626 = vmatpush1.msra.mxu0 0.0
        %627 = vmatprep.subr.mxu0 0.0
        %628 = vmatpush1.msra.mxu0 0.0
        %629 = vmatprep.subr.mxu0 0.0
        %630 = vmatpush1.msra.mxu0 0.0
        %631 = vmatprep.subr.mxu0 0.0
        %632 = vmatpush1.msra.mxu0 0.0
        %633 = vmatprep.subr.mxu0 0.0
        %634 = vmatpush1.msra.mxu0 0.0
        %635 = vmatprep.subr.mxu0 0.0
        %636 = vmatpush1.msra.mxu0 0.0
        %637 = vmatprep.subr.mxu0 0.0
        %638 = vmatpush1.msra.mxu0 0.0
        %639 = vmatprep.subr.mxu0 0.0
        %640 = vmatpush1.msra.mxu0 0.0
        %641 = vmatprep.subr.mxu0 0.0
        %642 = vmatpush1.msra.mxu0 0.0
        %643 = vmatprep.subr.mxu0 0.0
        %644 = vmatpush1.msra.mxu0 0.0
        %645 = vmatprep.subr.mxu0 0.0
        %646 = vmatpush1.msra.mxu0 0.0
        %647 = vmatprep.subr.mxu0 0.0
        %648 = vmatpush1.msra.mxu0 0.0
        %649 = vmatprep.subr.mxu0 0.0
        %650 = vmatpush1.msra.mxu0 0.0
        %651 = vmatprep.subr.mxu0 0.0
        %652 = vmatpush1.msra.mxu0 0.0
        %653 = vmatprep.subr.mxu0 0.0
        %654 = vmatpush1.msra.mxu0 0.0
        %655 = vmatprep.subr.mxu0 0.0
        %656 = vmatpush1.msra.mxu0 0.0
        %657 = vmatprep.subr.mxu0 0.0
        %658 = vmatpush1.msra.mxu0 0.0
        %659 = vmatprep.subr.mxu0 0.0
        %660 = vmatpush1.msra.mxu0 0.0
        %661 = vmatprep.subr.mxu0 0.0
        %662 = vmatpush1.msra.mxu0 0.0
        %663 = vmatprep.subr.mxu0 0.0
        %664 = vmatpush1.msra.mxu0 0.0
        %665 = vmatprep.mubr.f32.mxu0 0.0
        %666 = vmatmul.mubr.f32.gmra.mrb[0].mxu0 %v599
        %v667 = vpop.f32.mrb[0].mxu0
        %v668 = vadd.f32 0.0, %v667
        %v669 = vpop.f32.mrb[0].mxu0
        %670 = vdwg.mxu0
        %p671 = scmp.eq.s32.totalorder %s24, 0
        // Predicated region
        $region41: #{tpu_custom_call.1} parent=39 // pred_check
          %p672 = pneg %p671
        $region42: #{tpu_custom_call.1} parent=39 // pred_check_branch
          %674 = sbr.rel (%p672) target = $region44
        $region43: #{tpu_custom_call.1} parent=39 // pred_region
          %675 = vst.msk [vmem:[#allocation2] sm:$0xff] %vm326, 0.0
        $region44: #{tpu_custom_call.1} parent=39 // pred_fallthru
          _
        %v676 = vld [vmem:[#allocation2] sm:$0xff]
        %v677 = vadd.f32 %v676, %v668
        %678 = vst.msk [vmem:[#allocation2] sm:$0xff] %vm326, %v677
        %p679 = scmp.eq.s32.totalorder %s24, 3
        // Predicated region
        $region45: #{tpu_custom_call.1} parent=39 // pred_check
          %p680 = pneg %p679
        $region46: #{tpu_custom_call.1} parent=39 // pred_check_branch
          %682 = sbr.rel (%p680) target = $region48
        $region47: #{tpu_custom_call.1} parent=39 // pred_region
          %v683 = vld [vmem:[#allocation2] sm:$0xff]
          %684 = vst.msk [vmem:[%s279] sm:$0xff] %vm326, %v683
        $region48: #{tpu_custom_call.1} parent=39 // pred_fallthru
          _
        %s685 = sand.u32 %s169, 1
        %s686 = scalar_lea.sflag [#allocation4], %s685
        %s687 = sand.u32 %s169, 1
        %s688 = smul.addr %s687, 8
        %s689 = scalar_lea.vmem [#allocation3], %s688
        // Predicated region
        $region49: #{tpu_custom_call.1} parent=39 // pred_check
          %p690 = pneg %p179
        $region50: #{tpu_custom_call.1} parent=39 // pred_check_branch
          %692 = sbr.rel (%p690) target = $region52
        $region51: #{tpu_custom_call.1} parent=39 // pred_region
          %s694 = ssub.s32 128, 128
          %695 = vsyncadd %s686, %s694
          %s696 = smul.addr %s23, 128
          %s697 = scalar_lea.hbm %s5, %s696
          %s699 = sshll.u32 %s689, 4
          %s700 = int_to_ptr.vmem [resolvable:$true] %s699
          %702 = dma.vmem_to_hbm [thread:$0]  %s700, 128, %s697, %s686
        $region52: #{tpu_custom_call.1} parent=39 // pred_fallthru
          _
      $region40: #{tpu_custom_call.1} parent=5 // pred_fallthru
        _
      %p703 = scmp.le.s32.totalorder 2, %s14
      // Predicated region
      $region53: #{tpu_custom_call.1} parent=5 // pred_check
        %p704 = pneg %p703
      $region54: #{tpu_custom_call.1} parent=5 // pred_check_branch
        %706 = sbr.rel (%p704) target = $region56
      $region55: #{tpu_custom_call.1} parent=5 // pred_region
        %s707 = ssub.s32 %s14, 2
        // Predicated region
        $region57: #{tpu_custom_call.1} parent=55 // pred_check
          %p708 = pneg %p185
        $region58: #{tpu_custom_call.1} parent=55 // pred_check_branch
          %710 = sbr.rel (%p708) target = $region60
        $region59: #{tpu_custom_call.1} parent=55 // pred_region
          %s711 = sand.u32 %s170, 1
          %s712 = scalar_lea.sflag [#allocation4], %s711
          %s713 = sand.u32 %s170, 1
          %s714 = smul.addr %s713, 8
          %s715 = scalar_lea.vmem [#allocation3], %s714
          %716 = dma.done %s712, 128
        $region60: #{tpu_custom_call.1} parent=55 // pred_fallthru
          _
      $region56: #{tpu_custom_call.1} parent=5 // pred_fallthru
        _
    $region6: #{tpu_custom_call.1} parent=1 // loop_footer
      %s18 = sadd.s32 1, %s14
    $region7: #{tpu_custom_call.1} parent=1 // loop_footer_branch
      %13 = sbr.rel target = $region3
    $region8: #{tpu_custom_call.1} parent=1 // loop_exit
      _
    %717 = vsyncpa [#allocation4], 1
    %s718 = scalar_lea.sflag [#allocation4], 1
    %719 = vsyncpa %s718, 1

</llo_original>
